<compile_context>
chip_gen: v6e
topology: v6e:2x2x1
jax: 0.10.0
libtpu: 0.0.40
codegen_flags: <defaults>
</compile_context>

<pallas_src>
import jax
import jax.numpy as jnp
from jax.experimental import pallas as pl
from jax.experimental.pallas import tpu as pltpu

# --- model dimensions (vqa_model.opt['fusion'] is synthetic; dim_h/dim_a fixed) ---
DIM_V = 64        # fusion dim_v
DIM_Q = 32        # fusion dim_q
DIM_Z = 64        # fusion dim_mm
DIM_H = 300       # hard-coded in ContrastiveModel.__init__
DIM_H_PAD = 384   # next multiple of 128 -> lane-dense stores
DIM_A = 300       # answer embedding dim (module attr; unused in forward)
Q_VOCAB = 50
A_VOCAB = 30
KNN_SIZE = 3
NPREDS = KNN_SIZE + 1   # 4

TM_MAX = 1024     # max rows per tile (multiple of 8); ~6 MiB double-buffered VMEM


def _round_up(x, m):
    return ((x + m - 1) // m) * m


def _cx_kernel(v_ref, zq_ref, wv_ref, wl_ref, b_ref, out_ref, cat_ref):
    """Fusion + get_hidden for one TM-row tile."""
    v = v_ref[...]                                            # (TM, DIM_V) bf16

    # image-side fusion: zv = tanh(v Wv)   (bf16 MXU, f32 accumulate; f32 EUP)
    zv = jnp.tanh(jnp.dot(v, wv_ref[...],
                          preferred_element_type=jnp.float32))

    # gate with the per-question zq (computed once per question in the wrapper)
    z = zv * zq_ref[...].astype(jnp.float32)                  # (TM, DIM_Z) f32

    # get_hidden: relu(Linear(cat([v, z], dim=1))) — the "concat" is two
    # sub-lane stores into a (TM, 128) VMEM scratch, then ONE K=128 MXU matmul.
    cat_ref[:, :DIM_V] = v
    cat_ref[:, DIM_V:] = z.astype(jnp.bfloat16)
    h = jnp.dot(cat_ref[...], wl_ref[...],
                preferred_element_type=jnp.float32) + b_ref[...]
    out_ref[...] = jnp.maximum(h, 0.0)                        # (TM, DIM_H_PAD) f32


def contrastive_hidden_pallas(v_rows, zq_rows, wv, w_lin, b2d, *, tm):
    n_pad = v_rows.shape[0]
    assert n_pad % tm == 0 and tm % 8 == 0
    return pl.pallas_call(
        _cx_kernel,
        out_shape=jax.ShapeDtypeStruct((n_pad, DIM_H_PAD), jnp.float32),
        grid=(n_pad // tm,),
        in_specs=[
            pl.BlockSpec((tm, DIM_V), lambda i: (i, 0)),                 # v rows
            pl.BlockSpec((tm, DIM_Z), lambda i: (i, 0)),                 # zq rows
            pl.BlockSpec((DIM_V, DIM_Z), lambda i: (0, 0)),              # Wv (resident)
            pl.BlockSpec((DIM_V + DIM_Z, DIM_H_PAD), lambda i: (0, 0)),  # W_lin (resident)
            pl.BlockSpec((1, DIM_H_PAD), lambda i: (0, 0)),              # bias (resident)
        ],
        out_specs=pl.BlockSpec((tm, DIM_H_PAD), lambda i: (i, 0)),
        scratch_shapes=[pltpu.VMEM((tm, DIM_V + DIM_Z), jnp.bfloat16)],
        compiler_params=pltpu.CompilerParams(
            dimension_semantics=("parallel",)),   # shardable across v7x TCs
    )(v_rows, zq_rows, wv, w_lin, b2d)


def init_params(key):
    ks = jax.random.split(key, 6)
    scale = 0.05
    return {
        # vqa_model (synthetic, frozen as in trainable_vqa=False)
        "q_embed": scale * jax.random.normal(ks[0], (Q_VOCAB, DIM_Q), jnp.float32),
        "wv":      scale * jax.random.normal(ks[1], (DIM_V, DIM_Z), jnp.float32),
        "wq":      scale * jax.random.normal(ks[2], (DIM_Q, DIM_Z), jnp.float32),
        # ContrastiveModel params
        "a_embed": scale * jax.random.normal(ks[3], (A_VOCAB, DIM_A), jnp.float32),
        "w_lin":   scale * jax.random.normal(ks[4], (DIM_V + DIM_Z, DIM_H), jnp.float32),
        "b_lin":   scale * jax.random.normal(ks[5], (DIM_H,), jnp.float32),
    }


def contrastive_forward(params, image_features, question_wids, answer_aids):
    """ContrastiveModel.forward.  answer_aids / answer_embedding are unused by
    the PyTorch forward and are accepted only for interface fidelity."""
    del answer_aids
    b, n_preds, dim_v = image_features.shape
    assert n_preds == NPREDS and dim_v == DIM_V

    # vqa_model.seq2vec (JAX glue): embedding lookup + mean pool -> (B, DIM_Q)
    q_emb = jnp.mean(params["q_embed"][question_wids], axis=1)

    # q-side of the fusion, ONCE per question (not once per prediction)
    zq = jnp.tanh(q_emb @ params["wq"])                       # (B, DIM_Z) f32

    n = b * n_preds
    tm = min(TM_MAX, _round_up(n, 8))
    n_pad = _round_up(n, tm)

    v_rows = image_features.reshape(n, DIM_V)
    zq_rows = jnp.repeat(zq, n_preds, axis=0)                 # (n, DIM_Z)

    # pad the ragged row tail and move HBM operands to bf16 (halves DMA bytes)
    v_rows = jnp.pad(v_rows, ((0, n_pad - n), (0, 0))).astype(jnp.bfloat16)
    zq_rows = jnp.pad(zq_rows, ((0, n_pad - n), (0, 0))).astype(jnp.bfloat16)

    wv = params["wv"].astype(jnp.bfloat16)
    # pad the hidden dim 300 -> 384 with zero columns (sliced off below)
    w_lin = jnp.pad(params["w_lin"],
                    ((0, 0), (0, DIM_H_PAD - DIM_H))).astype(jnp.bfloat16)
    b2d = jnp.pad(params["b_lin"], (0, DIM_H_PAD - DIM_H)).reshape(1, DIM_H_PAD)

    out_pad = contrastive_hidden_pallas(v_rows, zq_rows, wv, w_lin, b2d, tm=tm)
    return out_pad[:n, :DIM_H].reshape(b, n_preds, DIM_H)


def contrastive_forward_ref(params, image_features, question_wids, answer_aids):
    """Pure-JAX f32 reference mirroring the PyTorch semantics."""
    del answer_aids
    b, n_preds, _ = image_features.shape
    q_emb = jnp.mean(params["q_embed"][question_wids], axis=1)
    q_dup = jnp.broadcast_to(q_emb[:, None, :], (b, n_preds, DIM_Q)).reshape(-1, DIM_Q)
    v_flat = image_features.reshape(-1, DIM_V)
    z = jnp.tanh(v_flat @ params["wv"]) * jnp.tanh(q_dup @ params["wq"])
    h = jnp.concatenate([v_flat, z], axis=1) @ params["w_lin"] + params["b_lin"]
    return jnp.maximum(h, 0.0).reshape(b, n_preds, DIM_H)


if __name__ == "__main__":
    key = jax.random.PRNGKey(0)
    k_par, k_img, k_q, k_a = jax.random.split(key, 4)

    batch = 2
    n_preds = NPREDS
    seq_len = 8

    params = init_params(k_par)
    image_features = jax.random.normal(k_img, (batch, n_preds, DIM_V), jnp.float32)
    question_wids = jax.random.randint(k_q, (batch, seq_len), 0, Q_VOCAB, jnp.int32)
    answer_aids = jax.random.randint(k_a, (batch,), 0, A_VOCAB, jnp.int32)

    out = contrastive_forward(params, image_features, question_wids, answer_aids)
    out = jax.block_until_ready(out)

    ref = contrastive_forward_ref(params, image_features, question_wids, answer_aids)
    assert out.shape == (batch, n_preds, DIM_H), out.shape
    # bf16 matmul operands -> loosened tolerance vs the f32 reference
    assert jnp.allclose(out, ref, rtol=3e-2, atol=3e-2), "mismatch vs reference"

    print("KERNEL_OK")
</pallas_src>

<mosaic_0001>
module attributes {stable_mosaic.version = 11 : i64} {
  func.func @_cx_kernel(%arg0: i32, %arg1: memref<8x64xbf16, #tpu.memory_space<vmem>>, %arg2: memref<8x64xbf16, #tpu.memory_space<vmem>>, %arg3: memref<64x64xbf16, #tpu.memory_space<vmem>>, %arg4: memref<128x384xbf16, #tpu.memory_space<vmem>>, %arg5: memref<1x384xf32, #tpu.memory_space<vmem>>, %arg6: memref<8x384xf32, #tpu.memory_space<vmem>>, %arg7: memref<8x128xbf16, #tpu.memory_space<vmem>>) attributes {dimension_semantics = [#tpu.dimension_semantics<parallel>], iteration_bounds = array<i64: 1>, scalar_prefetch = 0 : i64, scratch_operands = 1 : i64, tpu.core_type = #tpu.core_type<tc>, window_params = [{transform_indices = @transform_0, window_bounds = array<i64: 8, 64>}, {transform_indices = @transform_1, window_bounds = array<i64: 8, 64>}, {pipeline_mode = #tpu.pipeline_mode<synchronous>, transform_indices = @transform_2, window_bounds = array<i64: 64, 64>}, {pipeline_mode = #tpu.pipeline_mode<synchronous>, transform_indices = @transform_3, window_bounds = array<i64: 128, 384>}, {pipeline_mode = #tpu.pipeline_mode<synchronous>, transform_indices = @transform_4, window_bounds = array<i64: 1, 384>}, {transform_indices = @transform_5, window_bounds = array<i64: 8, 384>}]} {
    %c0 = arith.constant 0 : index
    %c0_0 = arith.constant 0 : index
    %0 = vector.load %arg1[%c0, %c0_0] : memref<8x64xbf16, #tpu.memory_space<vmem>>, vector<8x64xbf16>
    %c0_1 = arith.constant 0 : index
    %c0_2 = arith.constant 0 : index
    %1 = vector.load %arg3[%c0_1, %c0_2] : memref<64x64xbf16, #tpu.memory_space<vmem>>, vector<64x64xbf16>
    %cst = arith.constant dense<0.000000e+00> : vector<8x64xf32>
    %2 = tpu.matmul %0, %1, %cst {dimension_numbers = #tpu.dot_dimension_numbers<[1], [0], [0], [1], [0, 0, 1, 1], [], []>} : vector<8x64xbf16>, vector<64x64xbf16>, vector<8x64xf32> -> vector<8x64xf32>
    %3 = math.tanh %2 : vector<8x64xf32>
    %c0_3 = arith.constant 0 : index
    %c0_4 = arith.constant 0 : index
    %4 = vector.load %arg2[%c0_3, %c0_4] : memref<8x64xbf16, #tpu.memory_space<vmem>>, vector<8x64xbf16>
    %5 = arith.extf %4 : vector<8x64xbf16> to vector<8x64xf32>
    %6 = arith.mulf %3, %5 : vector<8x64xf32>
    %c0_5 = arith.constant 0 : index
    %c0_6 = arith.constant 0 : index
    %7 = vector.load %arg7[%c0_5, %c0_6] : memref<8x128xbf16, #tpu.memory_space<vmem>>, vector<8x64xbf16>
    tpu.vector_store %arg7[%c0_5, %c0_6], %0 {strides = array<i32>} : memref<8x128xbf16, #tpu.memory_space<vmem>>, vector<8x64xbf16>,
    %8 = arith.truncf %6 : vector<8x64xf32> to vector<8x64xbf16>
    %c0_7 = arith.constant 0 : index
    %c64 = arith.constant 64 : index
    %9 = vector.load %arg7[%c0_7, %c64] : memref<8x128xbf16, #tpu.memory_space<vmem>>, vector<8x64xbf16>
    tpu.vector_store %arg7[%c0_7, %c64], %8 {strides = array<i32>} : memref<8x128xbf16, #tpu.memory_space<vmem>>, vector<8x64xbf16>,
    %c0_8 = arith.constant 0 : index
    %c0_9 = arith.constant 0 : index
    %10 = vector.load %arg7[%c0_8, %c0_9] : memref<8x128xbf16, #tpu.memory_space<vmem>>, vector<8x128xbf16>
    %c0_10 = arith.constant 0 : index
    %c0_11 = arith.constant 0 : index
    %11 = vector.load %arg4[%c0_10, %c0_11] : memref<128x384xbf16, #tpu.memory_space<vmem>>, vector<128x384xbf16>
    %cst_12 = arith.constant dense<0.000000e+00> : vector<8x384xf32>
    %12 = tpu.matmul %10, %11, %cst_12 {dimension_numbers = #tpu.dot_dimension_numbers<[1], [0], [0], [1], [0, 0, 1, 1], [], []>} : vector<8x128xbf16>, vector<128x384xbf16>, vector<8x384xf32> -> vector<8x384xf32>
    %c0_13 = arith.constant 0 : index
    %c0_14 = arith.constant 0 : index
    %13 = vector.load %arg5[%c0_13, %c0_14] : memref<1x384xf32, #tpu.memory_space<vmem>>, vector<1x384xf32>
    %14 = vector.broadcast %13 : vector<1x384xf32> to vector<8x384xf32>
    %15 = arith.addf %12, %14 : vector<8x384xf32>
    %cst_15 = arith.constant 0.000000e+00 : f32
    %16 = vector.broadcast %cst_15 : f32 to vector<8x384xf32>
    %17 = arith.maximumf %15, %16 : vector<8x384xf32>
    %c0_16 = arith.constant 0 : index
    %c0_17 = arith.constant 0 : index
    %18 = vector.load %arg6[%c0_16, %c0_17] : memref<8x384xf32, #tpu.memory_space<vmem>>, vector<8x384xf32>
    tpu.vector_store %arg6[%c0_16, %c0_17], %17 {strides = array<i32>} : memref<8x384xf32, #tpu.memory_space<vmem>>, vector<8x384xf32>,
    return
  }
  func.func @transform_0(%arg0: i32) -> (i32, i32) {
    %c0_i32 = arith.constant 0 : i32
    %c0_i32_0 = arith.constant 0 : i32
    return %arg0, %c0_i32 : i32, i32
  }
  func.func @transform_1(%arg0: i32) -> (i32, i32) {
    %c0_i32 = arith.constant 0 : i32
    %c0_i32_0 = arith.constant 0 : i32
    return %arg0, %c0_i32 : i32, i32
  }
  func.func @transform_2(%arg0: i32) -> (i32, i32) {
    %c0_i32 = arith.constant 0 : i32
    %c0_i32_0 = arith.constant 0 : i32
    %c0_i32_1 = arith.constant 0 : i32
    return %c0_i32, %c0_i32_0 : i32, i32
  }
  func.func @transform_3(%arg0: i32) -> (i32, i32) {
    %c0_i32 = arith.constant 0 : i32
    %c0_i32_0 = arith.constant 0 : i32
    %c0_i32_1 = arith.constant 0 : i32
    return %c0_i32, %c0_i32_0 : i32, i32
  }
  func.func @transform_4(%arg0: i32) -> (i32, i32) {
    %c0_i32 = arith.constant 0 : i32
    %c0_i32_0 = arith.constant 0 : i32
    %c0_i32_1 = arith.constant 0 : i32
    return %c0_i32, %c0_i32_0 : i32, i32
  }
  func.func @transform_5(%arg0: i32) -> (i32, i32) {
    %c0_i32 = arith.constant 0 : i32
    %c0_i32_0 = arith.constant 0 : i32
    return %arg0, %c0_i32 : i32, i32
  }
}

</mosaic_0001>

<llo_original>
// kernel: tpu_custom_call.1
$region0: #{tpu_custom_call.1}
  #allocation0 [shape = 'u32[]', space=smem, size = 0x4, offset = 0x4, fixed_abs, tag = 'smem constant byte address 0x4 - core index']
  #allocation1 [shape = 'u32[144,128]{1,0:T(1,128)}', space=vmem, size = 0x12000, scoped, tag = 'internal scratch']
  #allocation2 [shape = 'bf16[8,128]{1,0:T(8,128)(2,1)}', space=vmem, size = 0x800, scoped, tag = 'scratch operand']
  %s0 = inlined_call_operand.hbm [shape: bf16[8,64], index: 0, kind: input, shape index: {}]
  %s1 = inlined_call_operand.hbm [shape: bf16[8,64], index: 1, kind: input, shape index: {}]
  %s2 = inlined_call_operand.hbm [shape: bf16[64,64], index: 2, kind: input, shape index: {}]
  %s3 = inlined_call_operand.hbm [shape: bf16[128,384], index: 3, kind: input, shape index: {}]
  %s4 = inlined_call_operand.vmem [shape: f32[1,384], index: 4, kind: input, shape index: {}]
  %s5 = inlined_call_operand.hbm [shape: f32[8,384], index: 5, kind: output, shape index: {}]
  %s6 = sld [smem:[#allocation0]]
  $region46: #{tpu_custom_call.1} parent=0
    _
  %s8 = ssub.s32 1, %s6
  %s9 = scalar_select 0, %s8, %s6
  $region1: #{tpu_custom_call.1} parent=0
    #allocation3 [shape = 'u8[2048]{0}', space=vmem, size = 0x800, scoped, tag = 'input window, operand 0, single buffered']
    #allocation4 [shape = 's32[1]{0}', space=sflag, size = 0x4, scoped, tag = 'scoped memory for tpu_custom_call.1']
    #allocation5 [shape = 's32[1]{0}', space=sflag, size = 0x4, scoped, tag = 'scoped memory for tpu_custom_call.1']
    #allocation6 [shape = 'u8[2048]{0}', space=vmem, size = 0x800, scoped, tag = 'input window, operand 1, single buffered']
    #allocation7 [shape = 's32[1]{0}', space=sflag, size = 0x4, scoped, tag = 'scoped memory for tpu_custom_call.1']
    #allocation8 [shape = 'u8[16384]{0}', space=vmem, size = 0x4000, scoped, tag = 'input window, operand 2, single buffered']
    #allocation9 [shape = 'u8[98304]{0}', space=vmem, size = 0x18000, scoped, tag = 'input window, operand 3, single buffered']
    #allocation10 [shape = 's32[1]{0}', space=sflag, size = 0x4, scoped, tag = 'scoped memory for tpu_custom_call.1']
    #allocation11 [shape = 'u8[12288]{0}', space=vmem, size = 0x3000, scoped, tag = 'output window, operand 0, single buffered']
    %10 = vsyncpa [#allocation4], 0
    %11 = vsyncpa [#allocation7], 0
    %12 = vsyncpa [#allocation10], 0
    %13 = vsyncpa [#allocation5], 0
    // Predicated region
    $region2: #{tpu_custom_call.1} parent=1 // pred_check
      _
    $region3: #{tpu_custom_call.1} parent=1 // pred_check_branch
      %15 = sbr.rel (0) target = $region5
    $region4: #{tpu_custom_call.1} parent=1 // pred_region
      %s17 = ssub.s32 64, 64
      %18 = vsyncadd [#allocation4], %s17
      %s20 = sshll.u32 [#allocation3], 4
      %s21 = int_to_ptr.vmem [resolvable:$true] %s20
      %23 = dma.hbm_to_vmem [thread:$0]  %s0, 64, %s21, [#allocation4]
    $region5: #{tpu_custom_call.1} parent=1 // pred_fallthru
      _
    // Predicated region
    $region6: #{tpu_custom_call.1} parent=1 // pred_check
      _
    $region7: #{tpu_custom_call.1} parent=1 // pred_check_branch
      %25 = sbr.rel (0) target = $region9
    $region8: #{tpu_custom_call.1} parent=1 // pred_region
      %s27 = ssub.s32 64, 64
      %28 = vsyncadd [#allocation7], %s27
      %s30 = sshll.u32 [#allocation6], 4
      %s31 = int_to_ptr.vmem [resolvable:$true] %s30
      %33 = dma.hbm_to_vmem [thread:$0]  %s1, 64, %s31, [#allocation7]
    $region9: #{tpu_custom_call.1} parent=1 // pred_fallthru
      _
    // Predicated region
    $region10: #{tpu_custom_call.1} parent=1 // pred_check
      _
    $region11: #{tpu_custom_call.1} parent=1 // pred_check_branch
      %35 = sbr.rel (0) target = $region13
    $region12: #{tpu_custom_call.1} parent=1 // pred_region
      %s37 = ssub.s32 512, 512
      %38 = vsyncadd [#allocation7], %s37
      %s39 = sshll.u32 [#allocation8], 4
      %s40 = int_to_ptr.vmem [resolvable:$true] %s39
      %45 = dma.hbm_to_vmem [thread:$0]  %s2, 512, %s40, [#allocation7], 64, 64, 4
    $region13: #{tpu_custom_call.1} parent=1 // pred_fallthru
      _
    // Predicated region
    $region14: #{tpu_custom_call.1} parent=1 // pred_check
      _
    $region15: #{tpu_custom_call.1} parent=1 // pred_check_branch
      %47 = sbr.rel (0) target = $region17
    $region16: #{tpu_custom_call.1} parent=1 // pred_region
      %s49 = ssub.s32 3072, 3072
      %50 = vsyncadd [#allocation10], %s49
      %s51 = sshll.u32 [#allocation9], 4
      %s52 = int_to_ptr.vmem [resolvable:$true] %s51
      %57 = dma.hbm_to_vmem [thread:$0]  %s3, 3072, %s52, [#allocation10], 192, 192, 12
    $region17: #{tpu_custom_call.1} parent=1 // pred_fallthru
      _
    // Predicated region
    $region18: #{tpu_custom_call.1} parent=1 // pred_check
      _
    $region19: #{tpu_custom_call.1} parent=1 // pred_check_branch
      %59 = sbr.rel (0) target = $region21
    $region20: #{tpu_custom_call.1} parent=1 // pred_region
      _
    $region21: #{tpu_custom_call.1} parent=1 // pred_fallthru
      _
    // Predicated region
    $region22: #{tpu_custom_call.1} parent=1 // pred_check
      _
    $region23: #{tpu_custom_call.1} parent=1 // pred_check_branch
      %61 = sbr.rel (0) target = $region25
    $region24: #{tpu_custom_call.1} parent=1 // pred_region
      %62 = dma.done [#allocation4], 64
    $region25: #{tpu_custom_call.1} parent=1 // pred_fallthru
      _
    // Predicated region
    $region26: #{tpu_custom_call.1} parent=1 // pred_check
      _
    $region27: #{tpu_custom_call.1} parent=1 // pred_check_branch
      %64 = sbr.rel (0) target = $region29
    $region28: #{tpu_custom_call.1} parent=1 // pred_region
      %65 = dma.done [#allocation7], 64
    $region29: #{tpu_custom_call.1} parent=1 // pred_fallthru
      _
    // Predicated region
    $region30: #{tpu_custom_call.1} parent=1 // pred_check
      _
    $region31: #{tpu_custom_call.1} parent=1 // pred_check_branch
      %67 = sbr.rel (0) target = $region33
    $region32: #{tpu_custom_call.1} parent=1 // pred_region
      %68 = dma.done [#allocation7], 512
    $region33: #{tpu_custom_call.1} parent=1 // pred_fallthru
      _
    // Predicated region
    $region34: #{tpu_custom_call.1} parent=1 // pred_check
      _
    $region35: #{tpu_custom_call.1} parent=1 // pred_check_branch
      %70 = sbr.rel (0) target = $region37
    $region36: #{tpu_custom_call.1} parent=1 // pred_region
      %71 = dma.done [#allocation10], 3072
    $region37: #{tpu_custom_call.1} parent=1 // pred_fallthru
      _
    %v73 = vld [vmem:[#allocation3] sm:$0xf]
    %v74 = vld [vmem:[#allocation8] sm:$0xf]
    %v75 = vld [vmem:[#allocation8 + $0x4] sm:$0xf]
    %v76 = vld [vmem:[#allocation8 + $0x8] sm:$0xf]
    %v77 = vld [vmem:[#allocation8 + $0xc] sm:$0xf]
    %v78 = vld [vmem:[#allocation8 + $0x10] sm:$0xf]
    %v79 = vld [vmem:[#allocation8 + $0x14] sm:$0xf]
    %v80 = vld [vmem:[#allocation8 + $0x18] sm:$0xf]
    %v81 = vld [vmem:[#allocation8 + $0x1c] sm:$0xf]
    %v90 = vunpack.c.l.b16 %v74
    %v91 = vunpack.c.l.b16 %v75
    %v92 = vunpack.c.l.b16 %v76
    %v93 = vunpack.c.l.b16 %v77
    %v94 = vunpack.c.l.b16 %v78
    %v95 = vunpack.c.l.b16 %v79
    %v96 = vunpack.c.l.b16 %v80
    %v97 = vunpack.c.l.b16 %v81
    %v98 = vpack.c.b16 %v91, %v90
    %v99 = vpack.c.b16 %v93, %v92
    %v100 = vpack.c.b16 %v95, %v94
    %v101 = vpack.c.b16 %v97, %v96
    %vm106 = vcmask 523264
    %v108 = vsel %vm106, %v73, 0
    %110 = vmatprep.subr.bf16.mxu0 0
    %111 = vmatpush1.bf16.msra.mxu0 0
    %112 = vmatprep.subr.bf16.mxu0 0
    %113 = vmatpush1.bf16.msra.mxu0 0
    %114 = vmatprep.subr.bf16.mxu0 0
    %115 = vmatpush1.bf16.msra.mxu0 0
    %116 = vmatprep.subr.bf16.mxu0 0
    %117 = vmatpush1.bf16.msra.mxu0 0
    %118 = vmatprep.subr.bf16.mxu0 0
    %119 = vmatpush1.bf16.msra.mxu0 %v101
    %120 = vmatprep.subr.bf16.mxu0 0
    %121 = vmatpush1.bf16.msra.mxu0 %v100
    %122 = vmatprep.subr.bf16.mxu0 0
    %123 = vmatpush1.bf16.msra.mxu0 %v99
    %124 = vmatprep.subr.bf16.mxu0 0
    %125 = vmatpush1.bf16.msra.mxu0 %v98
    %126 = vmatprep.subr.bf16.mxu0 0
    %127 = vmatpush2.bf16.msra.mxu0 0
    %128 = vmatprep.subr.bf16.mxu0 0
    %129 = vmatpush2.bf16.msra.mxu0 0
    %130 = vmatprep.subr.bf16.mxu0 0
    %131 = vmatpush2.bf16.msra.mxu0 0
    %132 = vmatprep.subr.bf16.mxu0 0
    %133 = vmatpush2.bf16.msra.mxu0 0
    %134 = vmatprep.subr.bf16.mxu0 0
    %135 = vmatpush2.bf16.msra.mxu0 0
    %136 = vmatprep.subr.bf16.mxu0 0
    %137 = vmatpush2.bf16.msra.mxu0 0
    %138 = vmatprep.subr.bf16.mxu0 0
    %139 = vmatpush2.bf16.msra.mxu0 0
    %140 = vmatprep.subr.bf16.mxu0 0
    %141 = vmatpush2.bf16.msra.mxu0 0
    %142 = vmatprep.mubr.bf16.mxu0 0
    %143 = vmatmul.mubr.bf16.gmra.mxu0 %v108
    %v144 = vpop.f32.mrf.mxu0
    %v145 = vadd.f32 0.0, %v144
    %v146 = vpop.f32.mrf.mxu0
    %v147 = vpop.f32.mrf.mxu0
    %v148 = vpop.f32.mrf.mxu0
    %149 = vdwg.mxu0
    %v150 = vtanh.pop %v145
    %v151 = vld [vmem:[#allocation6] sm:$0xf]
    %v152 = vunpack.c.l.bf16 %v151
    %v153 = vmul.f32 %v150, %v152
    %vm154 = vcmask 519168
    %155 = vst.msk [vmem:[#allocation2] sm:$0xf] %vm154, %v73
    %v156 = vpack.c.bf16 %v153, %v153
    %v158 = vunpack.c.l.b16 %v156
    %v159 = vpack.c.b16 %v158, %v158
    %160 = vrot.lane.b32.xlu0 %v159, 64
    %v161 = vpop.permute.xlu0 %160
    %vm163 = vcmask 1043968
    %164 = vst.msk [vmem:[#allocation2] sm:$0xf] %vm163, %v161
    %v165 = vld [vmem:[#allocation2] sm:$0xf]
    %v166 = vld [vmem:[#allocation9] sm:$0xff]
    %v167 = vld [vmem:[#allocation9 + $0x8] sm:$0xf]
    %v168 = vld [vmem:[#allocation9 + $0xc] sm:$0xff]
    %v169 = vld [vmem:[#allocation9 + $0x14] sm:$0xf]
    %v170 = vld [vmem:[#allocation9 + $0x18] sm:$0xff]
    %v171 = vld [vmem:[#allocation9 + $0x20] sm:$0xf]
    %v172 = vld [vmem:[#allocation9 + $0x24] sm:$0xff]
    %v173 = vld [vmem:[#allocation9 + $0x2c] sm:$0xf]
    %v174 = vld [vmem:[#allocation9 + $0x30] sm:$0xff]
    %v175 = vld [vmem:[#allocation9 + $0x38] sm:$0xf]
    %v176 = vld [vmem:[#allocation9 + $0x3c] sm:$0xff]
    %v177 = vld [vmem:[#allocation9 + $0x44] sm:$0xf]
    %v178 = vld [vmem:[#allocation9 + $0x48] sm:$0xff]
    %v179 = vld [vmem:[#allocation9 + $0x50] sm:$0xf]
    %v180 = vld [vmem:[#allocation9 + $0x54] sm:$0xff]
    %v181 = vld [vmem:[#allocation9 + $0x5c] sm:$0xf]
    %v182 = vld [vmem:[#allocation9 + $0x60] sm:$0xff]
    %v183 = vld [vmem:[#allocation9 + $0x68] sm:$0xf]
    %v184 = vld [vmem:[#allocation9 + $0x6c] sm:$0xff]
    %v185 = vld [vmem:[#allocation9 + $0x74] sm:$0xf]
    %v186 = vld [vmem:[#allocation9 + $0x78] sm:$0xff]
    %v187 = vld [vmem:[#allocation9 + $0x80] sm:$0xf]
    %v188 = vld [vmem:[#allocation9 + $0x84] sm:$0xff]
    %v189 = vld [vmem:[#allocation9 + $0x8c] sm:$0xf]
    %v190 = vld [vmem:[#allocation9 + $0x90] sm:$0xff]
    %v191 = vld [vmem:[#allocation9 + $0x98] sm:$0xf]
    %v192 = vld [vmem:[#allocation9 + $0x9c] sm:$0xff]
    %v193 = vld [vmem:[#allocation9 + $0xa4] sm:$0xf]
    %v194 = vld [vmem:[#allocation9 + $0xa8] sm:$0xff]
    %v195 = vld [vmem:[#allocation9 + $0xb0] sm:$0xf]
    %v196 = vld [vmem:[#allocation9 + $0xb4] sm:$0xff]
    %v197 = vld [vmem:[#allocation9 + $0xbc] sm:$0xf]
    %v198 = vld [vmem:[%s4] sm:$0x7]
    %v200 = vlaneseq
    %v201 = vshrl.u32 %v200, 7
    %v202 = vsub.s32 0, %v201
    %v203 = vrot.slane %v198, %v202
    %v204 = vlaneseq
    %v205 = vshrl.u32 %v204, 7
    %v206 = vsub.s32 1, %v205
    %v207 = vrot.slane %v198, %v206
    %v208 = vlaneseq
    %v209 = vshrl.u32 %v208, 7
    %v210 = vsub.s32 2, %v209
    %v211 = vrot.slane %v198, %v210
    %v247 = vunpack.c.l.b16 %v166
    %v248 = vunpack.c.h.b16 %v166
    %v249 = vunpack.c.l.b16 %v167
    %v250 = vunpack.c.l.b16 %v168
    %v251 = vunpack.c.h.b16 %v168
    %v252 = vunpack.c.l.b16 %v169
    %v253 = vunpack.c.l.b16 %v170
    %v254 = vunpack.c.h.b16 %v170
    %v255 = vunpack.c.l.b16 %v171
    %v256 = vunpack.c.l.b16 %v172
    %v257 = vunpack.c.h.b16 %v172
    %v258 = vunpack.c.l.b16 %v173
    %v259 = vunpack.c.l.b16 %v174
    %v260 = vunpack.c.h.b16 %v174
    %v261 = vunpack.c.l.b16 %v175
    %v262 = vunpack.c.l.b16 %v176
    %v263 = vunpack.c.h.b16 %v176
    %v264 = vunpack.c.l.b16 %v177
    %v265 = vunpack.c.l.b16 %v178
    %v266 = vunpack.c.h.b16 %v178
    %v267 = vunpack.c.l.b16 %v179
    %v268 = vunpack.c.l.b16 %v180
    %v269 = vunpack.c.h.b16 %v180
    %v270 = vunpack.c.l.b16 %v181
    %v271 = vunpack.c.l.b16 %v182
    %v272 = vunpack.c.h.b16 %v182
    %v273 = vunpack.c.l.b16 %v183
    %v274 = vunpack.c.l.b16 %v184
    %v275 = vunpack.c.h.b16 %v184
    %v276 = vunpack.c.l.b16 %v185
    %v277 = vunpack.c.l.b16 %v186
    %v278 = vunpack.c.h.b16 %v186
    %v279 = vunpack.c.l.b16 %v187
    %v280 = vunpack.c.l.b16 %v188
    %v281 = vunpack.c.h.b16 %v188
    %v282 = vunpack.c.l.b16 %v189
    %v283 = vunpack.c.l.b16 %v190
    %v284 = vunpack.c.h.b16 %v190
    %v285 = vunpack.c.l.b16 %v191
    %v286 = vunpack.c.l.b16 %v192
    %v287 = vunpack.c.h.b16 %v192
    %v288 = vunpack.c.l.b16 %v193
    %v289 = vunpack.c.l.b16 %v194
    %v290 = vunpack.c.h.b16 %v194
    %v291 = vunpack.c.l.b16 %v195
    %v292 = vunpack.c.l.b16 %v196
    %v293 = vunpack.c.h.b16 %v196
    %v294 = vunpack.c.l.b16 %v197
    %v295 = vpack.c.b16 %v250, %v247
    %v296 = vpack.c.b16 %v251, %v248
    %v297 = vpack.c.b16 %v252, %v249
    %v298 = vpack.c.b16 %v256, %v253
    %v299 = vpack.c.b16 %v257, %v254
    %v300 = vpack.c.b16 %v258, %v255
    %v301 = vpack.c.b16 %v262, %v259
    %v302 = vpack.c.b16 %v263, %v260
    %v303 = vpack.c.b16 %v264, %v261
    %v304 = vpack.c.b16 %v268, %v265
    %v305 = vpack.c.b16 %v269, %v266
    %v306 = vpack.c.b16 %v270, %v267
    %v307 = vpack.c.b16 %v274, %v271
    %v308 = vpack.c.b16 %v275, %v272
    %v309 = vpack.c.b16 %v276, %v273
    %v310 = vpack.c.b16 %v280, %v277
    %v311 = vpack.c.b16 %v281, %v278
    %v312 = vpack.c.b16 %v282, %v279
    %v313 = vpack.c.b16 %v286, %v283
    %v314 = vpack.c.b16 %v287, %v284
    %v315 = vpack.c.b16 %v288, %v285
    %v316 = vpack.c.b16 %v292, %v289
    %v317 = vpack.c.b16 %v293, %v290
    %v318 = vpack.c.b16 %v294, %v291
    %343 = vmatprep.subr.bf16.mxu0 %v317
    %344 = vmatpush1.bf16.msra.mxu0 %v316
    %345 = vmatprep.subr.bf16.mxu0 %v314
    %346 = vmatpush1.bf16.msra.mxu0 %v313
    %347 = vmatprep.subr.bf16.mxu0 %v311
    %348 = vmatpush1.bf16.msra.mxu0 %v310
    %349 = vmatprep.subr.bf16.mxu0 %v308
    %350 = vmatpush1.bf16.msra.mxu0 %v307
    %351 = vmatprep.subr.bf16.mxu0 %v305
    %352 = vmatpush1.bf16.msra.mxu0 %v304
    %353 = vmatprep.subr.bf16.mxu0 %v302
    %354 = vmatpush1.bf16.msra.mxu0 %v301
    %355 = vmatprep.subr.bf16.mxu0 %v299
    %356 = vmatpush1.bf16.msra.mxu0 %v298
    %357 = vmatprep.subr.bf16.mxu0 %v296
    %358 = vmatpush1.bf16.msra.mxu0 %v295
    %359 = vmatprep.subr.bf16.mxu0 0
    %360 = vmatpush2.bf16.msra.mxu0 0
    %361 = vmatprep.subr.bf16.mxu0 0
    %362 = vmatpush2.bf16.msra.mxu0 0
    %363 = vmatprep.subr.bf16.mxu0 0
    %364 = vmatpush2.bf16.msra.mxu0 0
    %365 = vmatprep.subr.bf16.mxu0 0
    %366 = vmatpush2.bf16.msra.mxu0 0
    %367 = vmatprep.subr.bf16.mxu0 0
    %368 = vmatpush2.bf16.msra.mxu0 0
    %369 = vmatprep.subr.bf16.mxu0 0
    %370 = vmatpush2.bf16.msra.mxu0 0
    %371 = vmatprep.subr.bf16.mxu0 0
    %372 = vmatpush2.bf16.msra.mxu0 0
    %373 = vmatprep.subr.bf16.mxu0 0
    %374 = vmatpush2.bf16.msra.mxu0 0
    %375 = vmatprep.mubr.bf16.mxu0 0
    %376 = vmatmul.mubr.bf16.gmra.mxu0 %v165
    %v377 = vpop.f32.mrf.mxu0
    %v378 = vadd.f32 %v203, %v377
    %v379 = vpop.f32.mrf.mxu0
    %v380 = vadd.f32 %v207, %v379
    %v381 = vpop.f32.mrf.mxu0
    %v382 = vpop.f32.mrf.mxu0
    %383 = vdwg.mxu0
    %384 = vmatprep.subr.bf16.mxu0 0
    %385 = vmatpush1.bf16.msra.mxu0 %v318
    %386 = vmatprep.subr.bf16.mxu0 0
    %387 = vmatpush1.bf16.msra.mxu0 %v315
    %388 = vmatprep.subr.bf16.mxu0 0
    %389 = vmatpush1.bf16.msra.mxu0 %v312
    %390 = vmatprep.subr.bf16.mxu0 0
    %391 = vmatpush1.bf16.msra.mxu0 %v309
    %392 = vmatprep.subr.bf16.mxu0 0
    %393 = vmatpush1.bf16.msra.mxu0 %v306
    %394 = vmatprep.subr.bf16.mxu0 0
    %395 = vmatpush1.bf16.msra.mxu0 %v303
    %396 = vmatprep.subr.bf16.mxu0 0
    %397 = vmatpush1.bf16.msra.mxu0 %v300
    %398 = vmatprep.subr.bf16.mxu0 0
    %399 = vmatpush1.bf16.msra.mxu0 %v297
    %400 = vmatprep.subr.bf16.mxu0 0
    %401 = vmatpush2.bf16.msra.mxu0 0
    %402 = vmatprep.subr.bf16.mxu0 0
    %403 = vmatpush2.bf16.msra.mxu0 0
    %404 = vmatprep.subr.bf16.mxu0 0
    %405 = vmatpush2.bf16.msra.mxu0 0
    %406 = vmatprep.subr.bf16.mxu0 0
    %407 = vmatpush2.bf16.msra.mxu0 0
    %408 = vmatprep.subr.bf16.mxu0 0
    %409 = vmatpush2.bf16.msra.mxu0 0
    %410 = vmatprep.subr.bf16.mxu0 0
    %411 = vmatpush2.bf16.msra.mxu0 0
    %412 = vmatprep.subr.bf16.mxu0 0
    %413 = vmatpush2.bf16.msra.mxu0 0
    %414 = vmatprep.subr.bf16.mxu0 0
    %415 = vmatpush2.bf16.msra.mxu0 0
    %416 = vmatprep.mubr.bf16.mxu0 0
    %417 = vmatmul.mubr.bf16.gmra.mxu0 %v165
    %v418 = vpop.f32.mrf.mxu0
    %v419 = vadd.f32 %v211, %v418
    %v420 = vpop.f32.mrf.mxu0
    %v421 = vpop.f32.mrf.mxu0
    %v422 = vpop.f32.mrf.mxu0
    %423 = vdwg.mxu0
    %v424 = vmax.f32 %v378, 0.0
    %v425 = vmax.f32 %v380, 0.0
    %v426 = vmax.f32 %v419, 0.0
    %427 = vst [vmem:[#allocation11] sm:$0xff] %v424
    %428 = vst [vmem:[#allocation11 + $0x8] sm:$0xff] %v425
    %429 = vst [vmem:[#allocation11 + $0x10] sm:$0xff] %v426
    // Predicated region
    $region38: #{tpu_custom_call.1} parent=1 // pred_check
      _
    $region39: #{tpu_custom_call.1} parent=1 // pred_check_branch
      %431 = sbr.rel (0) target = $region41
    $region40: #{tpu_custom_call.1} parent=1 // pred_region
      %s433 = ssub.s32 384, 384
      %434 = vsyncadd [#allocation5], %s433
      %s436 = sshll.u32 [#allocation11], 4
      %s437 = int_to_ptr.vmem [resolvable:$true] %s436
      %439 = dma.vmem_to_hbm [thread:$0]  %s437, 384, %s5, [#allocation5]
    $region41: #{tpu_custom_call.1} parent=1 // pred_fallthru
      _
    // Predicated region
    $region42: #{tpu_custom_call.1} parent=1 // pred_check
      _
    $region43: #{tpu_custom_call.1} parent=1 // pred_check_branch
      %441 = sbr.rel (0) target = $region45
    $region44: #{tpu_custom_call.1} parent=1 // pred_region
      %442 = dma.done [#allocation5], 384
    $region45: #{tpu_custom_call.1} parent=1 // pred_fallthru
      _
    %443 = vsyncpa [#allocation4], 1
    %444 = vsyncpa [#allocation7], 1
    %445 = vsyncpa [#allocation10], 1
    %446 = vsyncpa [#allocation5], 1

</llo_original>
